<compile_context>
chip_gen: v7x
topology: tpu7x:2x2x1
jax: 0.10.0
libtpu: 0.0.40
codegen_flags: <defaults>
</compile_context>

<pallas_src>
import functools
import math

import jax
import jax.numpy as jnp
from jax import lax
from jax.experimental import pallas as pl
from jax.experimental.pallas import tpu as pltpu


def _layernorm_kernel(x_ref, w_ref, b_ref, o_ref, *, eps, hidden, n_fold):
    """LayerNorm of each H-wide lane chunk of a (block_rows, n_fold*H) tile."""
    x = x_ref[...].astype(jnp.float32)  # (block_rows, n_fold * hidden)
    inv_h = 1.0 / hidden
    w = w_ref[...]                      # (1, n_fold * hidden) f32
    b = b_ref[...]

    if n_fold == 1:
        mean = jnp.sum(x, axis=-1, keepdims=True) * inv_h
        d = x - mean
        var = jnp.sum(d * d, axis=-1, keepdims=True) * inv_h
        inv = lax.rsqrt(var + eps)
        o_ref[...] = (d * inv * w + b).astype(o_ref.dtype)
    else:
        # Each original row occupies lanes [f*H, (f+1)*H) of the folded row.
        # Reductions stay strictly per-chunk, so partial-block garbage rows
        # never contaminate valid rows.
        chunks = []
        for f in range(n_fold):
            lo = f * hidden
            xc = x[:, lo:lo + hidden]
            mean = jnp.sum(xc, axis=-1, keepdims=True) * inv_h
            d = xc - mean
            var = jnp.sum(d * d, axis=-1, keepdims=True) * inv_h
            inv = lax.rsqrt(var + eps)
            chunks.append(d * inv)
        normed = jnp.concatenate(chunks, axis=-1)
        o_ref[...] = (normed * w + b).astype(o_ref.dtype)


def _pick_block_rows(rows, width, itemsize, *,
                     target_in_bytes=4 << 20,
                     vmem_budget_bytes=28 << 20):
    """Byte-based, dtype-aware block sizing.

    Per-element VMEM footprint estimate: 2x double-buffered input + 2x
    double-buffered output at native itemsize, plus ~12 B of f32 upcast
    temporaries (x, x-mean, squares) from the two-pass normalize.
    """
    per_row_bytes = width * (4 * itemsize + 12)
    max_rows = max(8, vmem_budget_bytes // per_row_bytes)
    target_rows = max(8, target_in_bytes // max(1, width * itemsize))
    br = min(int(target_rows), int(max_rows))
    br = max(8, (br // 8) * 8)          # sublane multiple
    rows_up = ((rows + 7) // 8) * 8     # don't exceed the (rounded-up) row count
    br = max(8, min(br, rows_up))
    return br


def swin_prenorm(hidden_states, weight, bias, *, eps=1e-5, block_rows=None):
    """LayerNorm over the last dim of hidden_states (SwinPreNorm_ forward)."""
    orig_shape = hidden_states.shape
    H = orig_shape[-1]
    rows = 1
    for d in orig_shape[:-1]:
        rows *= int(d)
    x2d = hidden_states.reshape(rows, H)

    # Lane-density fold: for H not a multiple of 128, fold F = lcm(H,128)/H
    # consecutive rows into one lane-dense row of width F*H.  Only worth it
    # (and only cheap) when F is small and rows divides evenly.
    n_fold = 1
    if H % 128 != 0:
        f = math.lcm(H, 128) // H
        if f <= 8 and rows % f == 0:
            n_fold = f
    width = n_fold * H
    rows_f = rows // n_fold
    if n_fold > 1:
        x2d = x2d.reshape(rows_f, width)  # contiguous reshape: no extra HBM pass

    itemsize = jnp.dtype(hidden_states.dtype).itemsize
    if block_rows is None:
        block_rows = _pick_block_rows(rows_f, width, itemsize)

    # Cast params to f32 once in the wrapper (hoisted out of the grid loop);
    # tile to the folded width so the kernel applies them in one fused pass.
    w2d = weight.astype(jnp.float32).reshape(1, H)
    b2d = bias.astype(jnp.float32).reshape(1, H)
    if n_fold > 1:
        w2d = jnp.tile(w2d, (1, n_fold))
        b2d = jnp.tile(b2d, (1, n_fold))

    kernel = functools.partial(_layernorm_kernel, eps=eps, hidden=H, n_fold=n_fold)
    out2d = pl.pallas_call(
        kernel,
        out_shape=jax.ShapeDtypeStruct((rows_f, width), hidden_states.dtype),
        grid_spec=pltpu.PrefetchScalarGridSpec(
            num_scalar_prefetch=0,
            grid=(pl.cdiv(rows_f, block_rows),),   # partial last block, no pad/slice
            in_specs=[
                pl.BlockSpec((block_rows, width), lambda i: (i, 0)),
                pl.BlockSpec((1, width), lambda i: (0, 0)),
                pl.BlockSpec((1, width), lambda i: (0, 0)),
            ],
            out_specs=pl.BlockSpec((block_rows, width), lambda i: (i, 0)),
        ),
        compiler_params=pltpu.CompilerParams(
            dimension_semantics=("parallel",),      # megacore sharding on v7x
            vmem_limit_bytes=48 << 20,              # safe headroom on v5e/v6e/v7x
        ),
    )(x2d, w2d, b2d)

    return out2d.reshape(orig_shape)


def _reference(hidden_states, weight, bias, eps=1e-5):
    x = hidden_states.astype(jnp.float32)
    mean = jnp.mean(x, axis=-1, keepdims=True)
    var = jnp.mean((x - mean) ** 2, axis=-1, keepdims=True)
    y = (x - mean) * lax.rsqrt(var + eps)
    return (y * weight + bias).astype(hidden_states.dtype)


def _check(shape, key_seed, dtype=jnp.float32, atol=1e-5, rtol=1e-5):
    H = shape[-1]
    key = jax.random.PRNGKey(key_seed)
    k_x, k_w, k_b = jax.random.split(key, 3)
    x = jax.random.normal(k_x, shape, dtype=dtype)
    w = 1.0 + 0.01 * jax.random.normal(k_w, (H,), dtype=jnp.float32)
    b = 0.01 * jax.random.normal(k_b, (H,), dtype=jnp.float32)
    out = jax.block_until_ready(swin_prenorm(x, w, b))
    ref = _reference(x, w, b)
    assert out.shape == shape
    assert jnp.allclose(out, ref, atol=atol, rtol=rtol), f"mismatch for shape {shape}"


if __name__ == "__main__":
    # Small Swin-like shapes.  The module's real hidden size (8*C: 768/1024/1536)
    # is lane-dense already; the toy H=32 / H=96 cases exercise the fold path.
    _check((2, 64, 32), key_seed=0)    # fold F=4 -> 128-lane rows
    _check((3, 49, 256), key_seed=1)   # lane-dense, non-divisible rows -> partial block
    _check((2, 64, 96), key_seed=2)    # Swin C=96-like, fold F=4 -> 384-lane rows
    _check((2, 49, 768), key_seed=3)   # production-like final-LayerNorm width
    print("KERNEL_OK")
</pallas_src>

<mosaic_0001>
module attributes {stable_mosaic.version = 11 : i64} {
  func.func @_layernorm_kernel(%arg0: i32, %arg1: memref<32x128xf32, #tpu.memory_space<vmem>>, %arg2: memref<1x128xf32, #tpu.memory_space<vmem>>, %arg3: memref<1x128xf32, #tpu.memory_space<vmem>>, %arg4: memref<32x128xf32, #tpu.memory_space<vmem>>) attributes {dimension_semantics = [#tpu.dimension_semantics<parallel>], iteration_bounds = array<i64: 1>, scalar_prefetch = 0 : i64, scratch_operands = 0 : i64, tpu.core_type = #tpu.core_type<tc>, window_params = [{transform_indices = @transform_0, window_bounds = array<i64: 32, 128>}, {pipeline_mode = #tpu.pipeline_mode<synchronous>, transform_indices = @transform_1, window_bounds = array<i64: 1, 128>}, {pipeline_mode = #tpu.pipeline_mode<synchronous>, transform_indices = @transform_2, window_bounds = array<i64: 1, 128>}, {transform_indices = @transform_3, window_bounds = array<i64: 32, 128>}]} {
    %c0 = arith.constant 0 : index
    %c0_0 = arith.constant 0 : index
    %0 = vector.load %arg1[%c0, %c0_0] : memref<32x128xf32, #tpu.memory_space<vmem>>, vector<32x128xf32>
    %c0_1 = arith.constant 0 : index
    %c0_2 = arith.constant 0 : index
    %1 = vector.load %arg2[%c0_1, %c0_2] : memref<1x128xf32, #tpu.memory_space<vmem>>, vector<1x128xf32>
    %c0_3 = arith.constant 0 : index
    %c0_4 = arith.constant 0 : index
    %2 = vector.load %arg3[%c0_3, %c0_4] : memref<1x128xf32, #tpu.memory_space<vmem>>, vector<1x128xf32>
    %3 = vector.extract_strided_slice %0 {offsets = [0, 0], sizes = [32, 32], strides = [1, 1]} : vector<32x128xf32> to vector<32x32xf32>
    %cst = arith.constant dense<0.000000e+00> : vector<32xf32>
    %4 = vector.multi_reduction <add>, %3, %cst [1] : vector<32x32xf32> to vector<32xf32>
    %5 = vector.shape_cast %4 : vector<32xf32> to vector<32x1xf32>
    %cst_5 = arith.constant 3.125000e-02 : f32
    %6 = vector.broadcast %cst_5 : f32 to vector<32x1xf32>
    %7 = arith.mulf %5, %6 : vector<32x1xf32>
    %8 = vector.broadcast %7 : vector<32x1xf32> to vector<32x32xf32>
    %9 = arith.subf %3, %8 : vector<32x32xf32>
    %10 = arith.mulf %9, %9 : vector<32x32xf32>
    %cst_6 = arith.constant dense<0.000000e+00> : vector<32xf32>
    %11 = vector.multi_reduction <add>, %10, %cst_6 [1] : vector<32x32xf32> to vector<32xf32>
    %12 = vector.shape_cast %11 : vector<32xf32> to vector<32x1xf32>
    %cst_7 = arith.constant 3.125000e-02 : f32
    %13 = vector.broadcast %cst_7 : f32 to vector<32x1xf32>
    %14 = arith.mulf %12, %13 : vector<32x1xf32>
    %cst_8 = arith.constant 9.99999974E-6 : f32
    %15 = vector.broadcast %cst_8 : f32 to vector<32x1xf32>
    %16 = arith.addf %14, %15 : vector<32x1xf32>
    %17 = math.rsqrt %16 : vector<32x1xf32>
    %18 = vector.broadcast %17 : vector<32x1xf32> to vector<32x32xf32>
    %19 = arith.mulf %9, %18 : vector<32x32xf32>
    %20 = vector.extract_strided_slice %0 {offsets = [0, 32], sizes = [32, 32], strides = [1, 1]} : vector<32x128xf32> to vector<32x32xf32>
    %cst_9 = arith.constant dense<0.000000e+00> : vector<32xf32>
    %21 = vector.multi_reduction <add>, %20, %cst_9 [1] : vector<32x32xf32> to vector<32xf32>
    %22 = vector.shape_cast %21 : vector<32xf32> to vector<32x1xf32>
    %cst_10 = arith.constant 3.125000e-02 : f32
    %23 = vector.broadcast %cst_10 : f32 to vector<32x1xf32>
    %24 = arith.mulf %22, %23 : vector<32x1xf32>
    %25 = vector.broadcast %24 : vector<32x1xf32> to vector<32x32xf32>
    %26 = arith.subf %20, %25 : vector<32x32xf32>
    %27 = arith.mulf %26, %26 : vector<32x32xf32>
    %cst_11 = arith.constant dense<0.000000e+00> : vector<32xf32>
    %28 = vector.multi_reduction <add>, %27, %cst_11 [1] : vector<32x32xf32> to vector<32xf32>
    %29 = vector.shape_cast %28 : vector<32xf32> to vector<32x1xf32>
    %cst_12 = arith.constant 3.125000e-02 : f32
    %30 = vector.broadcast %cst_12 : f32 to vector<32x1xf32>
    %31 = arith.mulf %29, %30 : vector<32x1xf32>
    %cst_13 = arith.constant 9.99999974E-6 : f32
    %32 = vector.broadcast %cst_13 : f32 to vector<32x1xf32>
    %33 = arith.addf %31, %32 : vector<32x1xf32>
    %34 = math.rsqrt %33 : vector<32x1xf32>
    %35 = vector.broadcast %34 : vector<32x1xf32> to vector<32x32xf32>
    %36 = arith.mulf %26, %35 : vector<32x32xf32>
    %37 = vector.extract_strided_slice %0 {offsets = [0, 64], sizes = [32, 32], strides = [1, 1]} : vector<32x128xf32> to vector<32x32xf32>
    %cst_14 = arith.constant dense<0.000000e+00> : vector<32xf32>
    %38 = vector.multi_reduction <add>, %37, %cst_14 [1] : vector<32x32xf32> to vector<32xf32>
    %39 = vector.shape_cast %38 : vector<32xf32> to vector<32x1xf32>
    %cst_15 = arith.constant 3.125000e-02 : f32
    %40 = vector.broadcast %cst_15 : f32 to vector<32x1xf32>
    %41 = arith.mulf %39, %40 : vector<32x1xf32>
    %42 = vector.broadcast %41 : vector<32x1xf32> to vector<32x32xf32>
    %43 = arith.subf %37, %42 : vector<32x32xf32>
    %44 = arith.mulf %43, %43 : vector<32x32xf32>
    %cst_16 = arith.constant dense<0.000000e+00> : vector<32xf32>
    %45 = vector.multi_reduction <add>, %44, %cst_16 [1] : vector<32x32xf32> to vector<32xf32>
    %46 = vector.shape_cast %45 : vector<32xf32> to vector<32x1xf32>
    %cst_17 = arith.constant 3.125000e-02 : f32
    %47 = vector.broadcast %cst_17 : f32 to vector<32x1xf32>
    %48 = arith.mulf %46, %47 : vector<32x1xf32>
    %cst_18 = arith.constant 9.99999974E-6 : f32
    %49 = vector.broadcast %cst_18 : f32 to vector<32x1xf32>
    %50 = arith.addf %48, %49 : vector<32x1xf32>
    %51 = math.rsqrt %50 : vector<32x1xf32>
    %52 = vector.broadcast %51 : vector<32x1xf32> to vector<32x32xf32>
    %53 = arith.mulf %43, %52 : vector<32x32xf32>
    %54 = vector.extract_strided_slice %0 {offsets = [0, 96], sizes = [32, 32], strides = [1, 1]} : vector<32x128xf32> to vector<32x32xf32>
    %cst_19 = arith.constant dense<0.000000e+00> : vector<32xf32>
    %55 = vector.multi_reduction <add>, %54, %cst_19 [1] : vector<32x32xf32> to vector<32xf32>
    %56 = vector.shape_cast %55 : vector<32xf32> to vector<32x1xf32>
    %cst_20 = arith.constant 3.125000e-02 : f32
    %57 = vector.broadcast %cst_20 : f32 to vector<32x1xf32>
    %58 = arith.mulf %56, %57 : vector<32x1xf32>
    %59 = vector.broadcast %58 : vector<32x1xf32> to vector<32x32xf32>
    %60 = arith.subf %54, %59 : vector<32x32xf32>
    %61 = arith.mulf %60, %60 : vector<32x32xf32>
    %cst_21 = arith.constant dense<0.000000e+00> : vector<32xf32>
    %62 = vector.multi_reduction <add>, %61, %cst_21 [1] : vector<32x32xf32> to vector<32xf32>
    %63 = vector.shape_cast %62 : vector<32xf32> to vector<32x1xf32>
    %cst_22 = arith.constant 3.125000e-02 : f32
    %64 = vector.broadcast %cst_22 : f32 to vector<32x1xf32>
    %65 = arith.mulf %63, %64 : vector<32x1xf32>
    %cst_23 = arith.constant 9.99999974E-6 : f32
    %66 = vector.broadcast %cst_23 : f32 to vector<32x1xf32>
    %67 = arith.addf %65, %66 : vector<32x1xf32>
    %68 = math.rsqrt %67 : vector<32x1xf32>
    %69 = vector.broadcast %68 : vector<32x1xf32> to vector<32x32xf32>
    %70 = arith.mulf %60, %69 : vector<32x32xf32>
    %71 = tpu.concatenate %19, %36, %53, %70 in 1 : vector<32x32xf32>, vector<32x32xf32>, vector<32x32xf32>, vector<32x32xf32> -> vector<32x128xf32>
    %72 = vector.broadcast %1 : vector<1x128xf32> to vector<32x128xf32>
    %73 = arith.mulf %71, %72 : vector<32x128xf32>
    %74 = vector.broadcast %2 : vector<1x128xf32> to vector<32x128xf32>
    %75 = arith.addf %73, %74 : vector<32x128xf32>
    %c0_24 = arith.constant 0 : index
    %c0_25 = arith.constant 0 : index
    %76 = vector.load %arg4[%c0_24, %c0_25] : memref<32x128xf32, #tpu.memory_space<vmem>>, vector<32x128xf32>
    tpu.vector_store %arg4[%c0_24, %c0_25], %75 {strides = array<i32>} : memref<32x128xf32, #tpu.memory_space<vmem>>, vector<32x128xf32>,
    return
  }
  func.func @transform_0(%arg0: i32) -> (i32, i32) {
    %c0_i32 = arith.constant 0 : i32
    %c0_i32_0 = arith.constant 0 : i32
    return %arg0, %c0_i32 : i32, i32
  }
  func.func @transform_1(%arg0: i32) -> (i32, i32) {
    %c0_i32 = arith.constant 0 : i32
    %c0_i32_0 = arith.constant 0 : i32
    %c0_i32_1 = arith.constant 0 : i32
    return %c0_i32, %c0_i32_0 : i32, i32
  }
  func.func @transform_2(%arg0: i32) -> (i32, i32) {
    %c0_i32 = arith.constant 0 : i32
    %c0_i32_0 = arith.constant 0 : i32
    %c0_i32_1 = arith.constant 0 : i32
    return %c0_i32, %c0_i32_0 : i32, i32
  }
  func.func @transform_3(%arg0: i32) -> (i32, i32) {
    %c0_i32 = arith.constant 0 : i32
    %c0_i32_0 = arith.constant 0 : i32
    return %arg0, %c0_i32 : i32, i32
  }
}

</mosaic_0001>

<llo_original>
// kernel: tpu_custom_call.1
$region0: #{tpu_custom_call.1}
  #allocation0 [shape = 'u32[]', space=smem, size = 0x4, offset = 0x4, fixed_abs, tag = 'smem constant byte address 0x4 - core index']
  #allocation1 [shape = 'u32[144,128]{1,0:T(1,128)}', space=vmem, size = 0x12000, scoped, tag = 'internal scratch']
  %s0 = inlined_call_operand.hbm [shape: f32[32,128], index: 0, kind: input, shape index: {}]
  %s1 = inlined_call_operand.vmem [shape: f32[1,128], index: 1, kind: input, shape index: {}]
  %s2 = inlined_call_operand.vmem [shape: f32[1,128], index: 2, kind: input, shape index: {}]
  %s3 = inlined_call_operand.hbm [shape: f32[32,128], index: 3, kind: output, shape index: {}]
  %s4 = sld [smem:[#allocation0]]
  $region26: #{tpu_custom_call.1} parent=0
    _
  %s6 = ssub.s32 1, %s4
  %s7 = scalar_select 0, %s6, %s4
  $region1: #{tpu_custom_call.1} parent=0
    #allocation2 [shape = 'u8[16384]{0}', space=vmem, size = 0x4000, scoped, tag = 'input window, operand 0, single buffered']
    #allocation3 [shape = 's32[1]{0}', space=sflag, size = 0x4, scoped, tag = 'scoped memory for tpu_custom_call.1']
    #allocation4 [shape = 's32[1]{0}', space=sflag, size = 0x4, scoped, tag = 'scoped memory for tpu_custom_call.1']
    #allocation5 [shape = 'u8[16384]{0}', space=vmem, size = 0x4000, scoped, tag = 'output window, operand 0, single buffered']
    %8 = vsyncpa [#allocation3], 0
    %9 = vsyncpa [#allocation4], 0
    // Predicated region
    $region2: #{tpu_custom_call.1} parent=1 // pred_check
      _
    $region3: #{tpu_custom_call.1} parent=1 // pred_check_branch
      %11 = sbr.rel (0) target = $region5
    $region4: #{tpu_custom_call.1} parent=1 // pred_region
      %s13 = ssub.s32 512, 512
      %14 = vsyncadd [#allocation3], %s13
      %s15 = sshll.u32 [#allocation2], 4
      %s16 = int_to_ptr.vmem [resolvable:$true] %s15
      %21 = dma.hbm_to_vmem [thread:$0]  %s0, 512, %s16, [#allocation3], 128, 128, 8
    $region5: #{tpu_custom_call.1} parent=1 // pred_fallthru
      _
    // Predicated region
    $region6: #{tpu_custom_call.1} parent=1 // pred_check
      _
    $region7: #{tpu_custom_call.1} parent=1 // pred_check_branch
      %23 = sbr.rel (0) target = $region9
    $region8: #{tpu_custom_call.1} parent=1 // pred_region
      _
    $region9: #{tpu_custom_call.1} parent=1 // pred_fallthru
      _
    // Predicated region
    $region10: #{tpu_custom_call.1} parent=1 // pred_check
      _
    $region11: #{tpu_custom_call.1} parent=1 // pred_check_branch
      %25 = sbr.rel (0) target = $region13
    $region12: #{tpu_custom_call.1} parent=1 // pred_region
      _
    $region13: #{tpu_custom_call.1} parent=1 // pred_fallthru
      _
    // Predicated region
    $region14: #{tpu_custom_call.1} parent=1 // pred_check
      _
    $region15: #{tpu_custom_call.1} parent=1 // pred_check_branch
      %27 = sbr.rel (0) target = $region17
    $region16: #{tpu_custom_call.1} parent=1 // pred_region
      %28 = dma.done [#allocation3], 512
    $region17: #{tpu_custom_call.1} parent=1 // pred_fallthru
      _
    %v29 = vld [vmem:[#allocation2] sm:$0xff]
    %v30 = vld [vmem:[#allocation2 + $0x8] sm:$0xff]
    %v31 = vld [vmem:[#allocation2 + $0x10] sm:$0xff]
    %v32 = vld [vmem:[#allocation2 + $0x18] sm:$0xff]
    %v33 = vld [vmem:[%s1] sm:$0x1]
    %v34 = vld [vmem:[%s2] sm:$0x1]
    %vm35 = vcmask 261120
    %v36 = vsel %vm35, %v29, 0.0
    %37 = vadd.xlane.f32.xlu0 %v36
    %v38 = vpop.xlane.xlu0 %37
    %v39 = vsel %vm35, %v30, 0.0
    %40 = vadd.xlane.f32.xlu0 %v39
    %v41 = vpop.xlane.xlu0 %40
    %v42 = vsel %vm35, %v31, 0.0
    %43 = vadd.xlane.f32.xlu0 %v42
    %v44 = vpop.xlane.xlu0 %43
    %v45 = vsel %vm35, %v32, 0.0
    %46 = vadd.xlane.f32.xlu0 %v45
    %v47 = vpop.xlane.xlu0 %46
    %v48 = vmul.f32 %v38, 0.03125
    %v49 = vmul.f32 %v41, 0.03125
    %v50 = vmul.f32 %v44, 0.03125
    %v51 = vmul.f32 %v47, 0.03125
    %v52 = vsub.f32 %v29, %v48
    %v53 = vsub.f32 %v30, %v49
    %v54 = vsub.f32 %v31, %v50
    %v55 = vsub.f32 %v32, %v51
    %v56 = vmul.f32 %v52, %v52
    %v57 = vmul.f32 %v53, %v53
    %v58 = vmul.f32 %v54, %v54
    %v59 = vmul.f32 %v55, %v55
    %v60 = vsel %vm35, %v56, 0.0
    %61 = vadd.xlane.f32.xlu0 %v60
    %v62 = vpop.xlane.xlu0 %61
    %v63 = vsel %vm35, %v57, 0.0
    %64 = vadd.xlane.f32.xlu0 %v63
    %v65 = vpop.xlane.xlu0 %64
    %v66 = vsel %vm35, %v58, 0.0
    %67 = vadd.xlane.f32.xlu0 %v66
    %v68 = vpop.xlane.xlu0 %67
    %v69 = vsel %vm35, %v59, 0.0
    %70 = vadd.xlane.f32.xlu0 %v69
    %v71 = vpop.xlane.xlu0 %70
    %v72 = vmul.f32 %v62, 0.03125
    %v73 = vmul.f32 %v65, 0.03125
    %v74 = vmul.f32 %v68, 0.03125
    %v75 = vmul.f32 %v71, 0.03125
    %v76 = vadd.f32 %v72, 1e-05
    %v77 = vadd.f32 %v73, 1e-05
    %v78 = vadd.f32 %v74, 1e-05
    %v79 = vadd.f32 %v75, 1e-05
    %v80 = vrsqrt.pop %v76
    %v81 = vrsqrt.pop %v77
    %v82 = vrsqrt.pop %v78
    %v83 = vrsqrt.pop %v79
    %v84 = vmul.f32 %v52, %v80
    %v85 = vmul.f32 %v53, %v81
    %v86 = vmul.f32 %v54, %v82
    %v87 = vmul.f32 %v55, %v83
    %92 = vrot.lane.b32.xlu0 %v29, 96
    %v93 = vpop.permute.xlu0 %92
    %94 = vrot.lane.b32.xlu0 %v30, 96
    %v95 = vpop.permute.xlu0 %94
    %96 = vrot.lane.b32.xlu0 %v31, 96
    %v97 = vpop.permute.xlu0 %96
    %98 = vrot.lane.b32.xlu0 %v32, 96
    %v99 = vpop.permute.xlu0 %98
    %v104 = vsel %vm35, %v93, 0.0
    %105 = vadd.xlane.f32.xlu0 %v104
    %v106 = vpop.xlane.xlu0 %105
    %v107 = vsel %vm35, %v95, 0.0
    %108 = vadd.xlane.f32.xlu0 %v107
    %v109 = vpop.xlane.xlu0 %108
    %v110 = vsel %vm35, %v97, 0.0
    %111 = vadd.xlane.f32.xlu0 %v110
    %v112 = vpop.xlane.xlu0 %111
    %v113 = vsel %vm35, %v99, 0.0
    %114 = vadd.xlane.f32.xlu0 %v113
    %v115 = vpop.xlane.xlu0 %114
    %v116 = vmul.f32 %v106, 0.03125
    %v117 = vmul.f32 %v109, 0.03125
    %v118 = vmul.f32 %v112, 0.03125
    %v119 = vmul.f32 %v115, 0.03125
    %v120 = vsub.f32 %v29, %v116
    %v121 = vsub.f32 %v30, %v117
    %v122 = vsub.f32 %v31, %v118
    %v123 = vsub.f32 %v32, %v119
    %v124 = vmul.f32 %v120, %v120
    %v125 = vmul.f32 %v121, %v121
    %v126 = vmul.f32 %v122, %v122
    %v127 = vmul.f32 %v123, %v123
    %132 = vrot.lane.b32.xlu0 %v124, 96
    %v133 = vpop.permute.xlu0 %132
    %134 = vrot.lane.b32.xlu0 %v125, 96
    %v135 = vpop.permute.xlu0 %134
    %136 = vrot.lane.b32.xlu0 %v126, 96
    %v137 = vpop.permute.xlu0 %136
    %138 = vrot.lane.b32.xlu0 %v127, 96
    %v139 = vpop.permute.xlu0 %138
    %v144 = vsel %vm35, %v133, 0.0
    %145 = vadd.xlane.f32.xlu0 %v144
    %v146 = vpop.xlane.xlu0 %145
    %v147 = vsel %vm35, %v135, 0.0
    %148 = vadd.xlane.f32.xlu0 %v147
    %v149 = vpop.xlane.xlu0 %148
    %v150 = vsel %vm35, %v137, 0.0
    %151 = vadd.xlane.f32.xlu0 %v150
    %v152 = vpop.xlane.xlu0 %151
    %v153 = vsel %vm35, %v139, 0.0
    %154 = vadd.xlane.f32.xlu0 %v153
    %v155 = vpop.xlane.xlu0 %154
    %v156 = vmul.f32 %v146, 0.03125
    %v157 = vmul.f32 %v149, 0.03125
    %v158 = vmul.f32 %v152, 0.03125
    %v159 = vmul.f32 %v155, 0.03125
    %v160 = vadd.f32 %v156, 1e-05
    %v161 = vadd.f32 %v157, 1e-05
    %v162 = vadd.f32 %v158, 1e-05
    %v163 = vadd.f32 %v159, 1e-05
    %v164 = vrsqrt.pop %v160
    %v165 = vrsqrt.pop %v161
    %v166 = vrsqrt.pop %v162
    %v167 = vrsqrt.pop %v163
    %v168 = vmul.f32 %v120, %v164
    %v169 = vmul.f32 %v121, %v165
    %v170 = vmul.f32 %v122, %v166
    %v171 = vmul.f32 %v123, %v167
    %172 = vrot.lane.b32.xlu0 %v29, 64
    %v173 = vpop.permute.xlu0 %172
    %174 = vrot.lane.b32.xlu0 %v30, 64
    %v175 = vpop.permute.xlu0 %174
    %176 = vrot.lane.b32.xlu0 %v31, 64
    %v177 = vpop.permute.xlu0 %176
    %178 = vrot.lane.b32.xlu0 %v32, 64
    %v179 = vpop.permute.xlu0 %178
    %v184 = vsel %vm35, %v173, 0.0
    %185 = vadd.xlane.f32.xlu0 %v184
    %v186 = vpop.xlane.xlu0 %185
    %v187 = vsel %vm35, %v175, 0.0
    %188 = vadd.xlane.f32.xlu0 %v187
    %v189 = vpop.xlane.xlu0 %188
    %v190 = vsel %vm35, %v177, 0.0
    %191 = vadd.xlane.f32.xlu0 %v190
    %v192 = vpop.xlane.xlu0 %191
    %v193 = vsel %vm35, %v179, 0.0
    %194 = vadd.xlane.f32.xlu0 %v193
    %v195 = vpop.xlane.xlu0 %194
    %v196 = vmul.f32 %v186, 0.03125
    %v197 = vmul.f32 %v189, 0.03125
    %v198 = vmul.f32 %v192, 0.03125
    %v199 = vmul.f32 %v195, 0.03125
    %v200 = vsub.f32 %v29, %v196
    %v201 = vsub.f32 %v30, %v197
    %v202 = vsub.f32 %v31, %v198
    %v203 = vsub.f32 %v32, %v199
    %v204 = vmul.f32 %v200, %v200
    %v205 = vmul.f32 %v201, %v201
    %v206 = vmul.f32 %v202, %v202
    %v207 = vmul.f32 %v203, %v203
    %212 = vrot.lane.b32.xlu0 %v204, 64
    %v213 = vpop.permute.xlu0 %212
    %214 = vrot.lane.b32.xlu0 %v205, 64
    %v215 = vpop.permute.xlu0 %214
    %216 = vrot.lane.b32.xlu0 %v206, 64
    %v217 = vpop.permute.xlu0 %216
    %218 = vrot.lane.b32.xlu0 %v207, 64
    %v219 = vpop.permute.xlu0 %218
    %v224 = vsel %vm35, %v213, 0.0
    %225 = vadd.xlane.f32.xlu0 %v224
    %v226 = vpop.xlane.xlu0 %225
    %v227 = vsel %vm35, %v215, 0.0
    %228 = vadd.xlane.f32.xlu0 %v227
    %v229 = vpop.xlane.xlu0 %228
    %v230 = vsel %vm35, %v217, 0.0
    %231 = vadd.xlane.f32.xlu0 %v230
    %v232 = vpop.xlane.xlu0 %231
    %v233 = vsel %vm35, %v219, 0.0
    %234 = vadd.xlane.f32.xlu0 %v233
    %v235 = vpop.xlane.xlu0 %234
    %v236 = vmul.f32 %v226, 0.03125
    %v237 = vmul.f32 %v229, 0.03125
    %v238 = vmul.f32 %v232, 0.03125
    %v239 = vmul.f32 %v235, 0.03125
    %v240 = vadd.f32 %v236, 1e-05
    %v241 = vadd.f32 %v237, 1e-05
    %v242 = vadd.f32 %v238, 1e-05
    %v243 = vadd.f32 %v239, 1e-05
    %v244 = vrsqrt.pop %v240
    %v245 = vrsqrt.pop %v241
    %v246 = vrsqrt.pop %v242
    %v247 = vrsqrt.pop %v243
    %v248 = vmul.f32 %v200, %v244
    %v249 = vmul.f32 %v201, %v245
    %v250 = vmul.f32 %v202, %v246
    %v251 = vmul.f32 %v203, %v247
    %252 = vrot.lane.b32.xlu0 %v29, 32
    %v253 = vpop.permute.xlu0 %252
    %254 = vrot.lane.b32.xlu0 %v30, 32
    %v255 = vpop.permute.xlu0 %254
    %256 = vrot.lane.b32.xlu0 %v31, 32
    %v257 = vpop.permute.xlu0 %256
    %258 = vrot.lane.b32.xlu0 %v32, 32
    %v259 = vpop.permute.xlu0 %258
    %v264 = vsel %vm35, %v253, 0.0
    %265 = vadd.xlane.f32.xlu0 %v264
    %v266 = vpop.xlane.xlu0 %265
    %v267 = vsel %vm35, %v255, 0.0
    %268 = vadd.xlane.f32.xlu0 %v267
    %v269 = vpop.xlane.xlu0 %268
    %v270 = vsel %vm35, %v257, 0.0
    %271 = vadd.xlane.f32.xlu0 %v270
    %v272 = vpop.xlane.xlu0 %271
    %v273 = vsel %vm35, %v259, 0.0
    %274 = vadd.xlane.f32.xlu0 %v273
    %v275 = vpop.xlane.xlu0 %274
    %v276 = vmul.f32 %v266, 0.03125
    %v277 = vmul.f32 %v269, 0.03125
    %v278 = vmul.f32 %v272, 0.03125
    %v279 = vmul.f32 %v275, 0.03125
    %v280 = vsub.f32 %v29, %v276
    %v281 = vsub.f32 %v30, %v277
    %v282 = vsub.f32 %v31, %v278
    %v283 = vsub.f32 %v32, %v279
    %v284 = vmul.f32 %v280, %v280
    %v285 = vmul.f32 %v281, %v281
    %v286 = vmul.f32 %v282, %v282
    %v287 = vmul.f32 %v283, %v283
    %292 = vrot.lane.b32.xlu0 %v284, 32
    %v293 = vpop.permute.xlu0 %292
    %294 = vrot.lane.b32.xlu0 %v285, 32
    %v295 = vpop.permute.xlu0 %294
    %296 = vrot.lane.b32.xlu0 %v286, 32
    %v297 = vpop.permute.xlu0 %296
    %298 = vrot.lane.b32.xlu0 %v287, 32
    %v299 = vpop.permute.xlu0 %298
    %v304 = vsel %vm35, %v293, 0.0
    %305 = vadd.xlane.f32.xlu0 %v304
    %v306 = vpop.xlane.xlu0 %305
    %v307 = vsel %vm35, %v295, 0.0
    %308 = vadd.xlane.f32.xlu0 %v307
    %v309 = vpop.xlane.xlu0 %308
    %v310 = vsel %vm35, %v297, 0.0
    %311 = vadd.xlane.f32.xlu0 %v310
    %v312 = vpop.xlane.xlu0 %311
    %v313 = vsel %vm35, %v299, 0.0
    %314 = vadd.xlane.f32.xlu0 %v313
    %v315 = vpop.xlane.xlu0 %314
    %v316 = vmul.f32 %v306, 0.03125
    %v317 = vmul.f32 %v309, 0.03125
    %v318 = vmul.f32 %v312, 0.03125
    %v319 = vmul.f32 %v315, 0.03125
    %v320 = vadd.f32 %v316, 1e-05
    %v321 = vadd.f32 %v317, 1e-05
    %v322 = vadd.f32 %v318, 1e-05
    %v323 = vadd.f32 %v319, 1e-05
    %v324 = vrsqrt.pop %v320
    %v325 = vrsqrt.pop %v321
    %v326 = vrsqrt.pop %v322
    %v327 = vrsqrt.pop %v323
    %v328 = vmul.f32 %v280, %v324
    %v329 = vmul.f32 %v281, %v325
    %v330 = vmul.f32 %v282, %v326
    %v331 = vmul.f32 %v283, %v327
    %v332 = vsel %vm35, %v84, %v168
    %v333 = vsel %vm35, %v85, %v169
    %v334 = vsel %vm35, %v86, %v170
    %v335 = vsel %vm35, %v87, %v171
    %vm336 = vcmask 523264
    %v337 = vsel %vm336, %v332, %v248
    %v338 = vsel %vm336, %v333, %v249
    %v339 = vsel %vm336, %v334, %v250
    %v340 = vsel %vm336, %v335, %v251
    %vm341 = vcmask 785408
    %v342 = vsel %vm341, %v337, %v328
    %v343 = vsel %vm341, %v338, %v329
    %v344 = vsel %vm341, %v339, %v330
    %v345 = vsel %vm341, %v340, %v331
    %v347 = vlaneseq
    %v348 = vshrl.u32 %v347, 7
    %v349 = vsub.s32 0, %v348
    %v350 = vrot.slane %v33, %v349
    %v352 = vmul.f32 %v342, %v350
    %v353 = vmul.f32 %v343, %v350
    %v354 = vmul.f32 %v344, %v350
    %v355 = vmul.f32 %v345, %v350
    %v357 = vlaneseq
    %v358 = vshrl.u32 %v357, 7
    %v359 = vsub.s32 0, %v358
    %v360 = vrot.slane %v34, %v359
    %v362 = vadd.f32 %v352, %v360
    %v363 = vadd.f32 %v353, %v360
    %v364 = vadd.f32 %v354, %v360
    %v365 = vadd.f32 %v355, %v360
    %366 = vst [vmem:[#allocation5] sm:$0xff] %v362
    %367 = vst [vmem:[#allocation5 + $0x8] sm:$0xff] %v363
    %368 = vst [vmem:[#allocation5 + $0x10] sm:$0xff] %v364
    %369 = vst [vmem:[#allocation5 + $0x18] sm:$0xff] %v365
    // Predicated region
    $region18: #{tpu_custom_call.1} parent=1 // pred_check
      _
    $region19: #{tpu_custom_call.1} parent=1 // pred_check_branch
      %371 = sbr.rel (0) target = $region21
    $region20: #{tpu_custom_call.1} parent=1 // pred_region
      %s373 = ssub.s32 512, 512
      %374 = vsyncadd [#allocation4], %s373
      %s375 = sshll.u32 [#allocation5], 4
      %s376 = int_to_ptr.vmem [resolvable:$true] %s375
      %381 = dma.vmem_to_hbm [thread:$0]  %s376, 512, %s3, [#allocation4], 128, 128, 8
    $region21: #{tpu_custom_call.1} parent=1 // pred_fallthru
      _
    // Predicated region
    $region22: #{tpu_custom_call.1} parent=1 // pred_check
      _
    $region23: #{tpu_custom_call.1} parent=1 // pred_check_branch
      %383 = sbr.rel (0) target = $region25
    $region24: #{tpu_custom_call.1} parent=1 // pred_region
      %384 = dma.done [#allocation4], 512
    $region25: #{tpu_custom_call.1} parent=1 // pred_fallthru
      _
    %385 = vsyncpa [#allocation3], 1
    %386 = vsyncpa [#allocation4], 1

</llo_original>
